<compile_context>
chip_gen: v7x
topology: tpu7x:2x2x1
jax: 0.10.0
libtpu: 0.0.40
codegen_flags: <defaults>
</compile_context>

<pallas_src>
import math

import jax
import jax.numpy as jnp
from jax.experimental import pallas as pl
from jax.experimental.pallas import tpu as pltpu


# ---------------------------------------------------------------------------
# Kernel: relu(x @ w1 + b1) @ w2 + b2, all operands already in VMEM.
# ---------------------------------------------------------------------------
def _fused_mlp_kernel(x_ref, w1_ref, b1_ref, w2_ref, b2_ref, o_ref):
    # x: (B, K)  w1: (K, H)  b1: (1, H)  w2: (H, N)  b2: (1, N)  o: (B, N)
    h = jnp.dot(x_ref[...], w1_ref[...], preferred_element_type=jnp.float32)
    h = jnp.maximum(h + b1_ref[...], 0.0)            # bias broadcast + ReLU
    # Keep h in f32 as the LHS; do not downcast to the weight dtype.
    y = jnp.dot(h, w2_ref[...], preferred_element_type=jnp.float32)
    y = y + b2_ref[...]
    o_ref[...] = y.astype(o_ref.dtype)


# ---------------------------------------------------------------------------
# Helpers for the lane-dense (block-diagonal) large-batch path.
# ---------------------------------------------------------------------------
def _round_up(n, m):
    return ((n + m - 1) // m) * m


def _block_diag(w, pack):
    """Repack w (kin, kout) into a pack-x block-diagonal (pack*kin, pack*kout)."""
    kin, kout = w.shape
    out = jnp.zeros((pack * kin, pack * kout), dtype=w.dtype)
    for j in range(pack):
        out = out.at[j * kin:(j + 1) * kin, j * kout:(j + 1) * kout].set(w)
    return out


# Batches at or below this go through the gridless whole-in-VMEM path
# (<= 256 * 64 * 4 B = 64 KiB of activations -- trivially fits everywhere).
_SMALL_BATCH_ROWS = 256


def fused_mlp(x, w1, b1, w2, b2, *, block_b=4096):
    """Single-pallas_call fused forward: relu(x @ w1 + b1) @ w2 + b2."""
    B, K = x.shape
    K1, H = w1.shape
    H2, N = w2.shape
    assert K == K1 and H == H2
    b1_2d = b1.reshape(1, H)
    b2_2d = b2.reshape(1, N)

    # ---------------- small-batch path: gridless, single invocation --------
    if B <= _SMALL_BATCH_ROWS:
        vmem = pl.BlockSpec(memory_space=pltpu.MemorySpace.VMEM)
        return pl.pallas_call(
            _fused_mlp_kernel,
            out_shape=jax.ShapeDtypeStruct((B, N), x.dtype),
            in_specs=[vmem, vmem, vmem, vmem, vmem],
            out_specs=vmem,
        )(x, w1, b1_2d, w2, b2_2d)

    # ---------------- large-batch path: lane-dense, batch-tiled ------------
    # Pack `pack` consecutive rows into one 128-lane row and use
    # block-diagonal weights so rows remain independent.
    if K < 128 and N < 128 and 128 % K == 0 and 128 % N == 0:
        pack = 128 // math.gcd(K, N)
    else:
        pack = 1

    if pack > 1:
        w1_p = _block_diag(w1, pack)                 # (pack*K, pack*H)
        w2_p = _block_diag(w2, pack)                 # (pack*H, pack*N)
        b1_p = jnp.tile(b1_2d, (1, pack))            # (1, pack*H)
        b2_p = jnp.tile(b2_2d, (1, pack))            # (1, pack*N)
    else:
        w1_p, w2_p, b1_p, b2_p = w1, w2, b1_2d, b2_2d

    Kp, Hp, Np = K * pack, H * pack, N * pack

    # Packed-row tiling.  block_b is in original rows; block_rows in packed
    # rows (multiple of 8 sublanes).
    rows_total = pl.cdiv(B, pack)
    block_rows = max(8, (block_b // pack) // 8 * 8)
    n_blocks = pl.cdiv(rows_total, block_rows)
    if n_blocks < 2 and rows_total >= 16:
        # Keep >= 2 grid steps so the "parallel" axis can feed both v7x
        # TensorCores (megacore) instead of leaving one idle.
        block_rows = max(8, _round_up(pl.cdiv(rows_total, 2), 8))
        n_blocks = pl.cdiv(rows_total, block_rows)

    padded_rows = n_blocks * block_rows
    B_pad = padded_rows * pack
    x_p = x if B_pad == B else jnp.pad(x, ((0, B_pad - B), (0, 0)))
    x_p = x_p.reshape(padded_rows, Kp)               # free row-major view

    itemsize = jnp.dtype(x.dtype).itemsize
    cost = pl.CostEstimate(
        flops=2 * B * (K * H + H * N),
        transcendentals=0,
        bytes_accessed=B * (K + N) * itemsize
        + (w1_p.size + w2_p.size + b1_p.size + b2_p.size)
        * jnp.dtype(w1_p.dtype).itemsize,
    )

    out_p = pl.pallas_call(
        _fused_mlp_kernel,
        out_shape=jax.ShapeDtypeStruct((padded_rows, Np), x.dtype),
        grid=(n_blocks,),
        in_specs=[
            pl.BlockSpec((block_rows, Kp), lambda i: (i, 0)),
            pl.BlockSpec((Kp, Hp), lambda i: (0, 0)),   # weights stay resident
            pl.BlockSpec((1, Hp), lambda i: (0, 0)),
            pl.BlockSpec((Hp, Np), lambda i: (0, 0)),
            pl.BlockSpec((1, Np), lambda i: (0, 0)),
        ],
        out_specs=pl.BlockSpec((block_rows, Np), lambda i: (i, 0)),
        compiler_params=pltpu.CompilerParams(
            dimension_semantics=("parallel",)),
        cost_estimate=cost,
    )(x_p, w1_p, b1_p, w2_p, b2_p)

    out = out_p.reshape(B_pad, N)
    return out if B_pad == B else out[:B]


# ---------------------------------------------------------------------------
# Sequential container (JAX/Pallas equivalent of the PyTorch CustomModel).
# ---------------------------------------------------------------------------
class CustomModelPallas:
    """Applies layers in order, like the PyTorch CustomModel."""

    def __init__(self, layers):
        self.layers = list(layers)

    def __call__(self, x):
        for layer in self.layers:
            x = layer(x)
        return x


def make_fused_mlp_layer(w1, b1, w2, b2, **kw):
    # Linear -> ReLU -> Linear collapsed into one Pallas layer (same math as
    # applying the three torch layers sequentially).
    return lambda x: fused_mlp(x, w1, b1, w2, b2, **kw)


if __name__ == "__main__":
    key = jax.random.PRNGKey(0)
    k_x, k_w1, k_b1, k_w2, k_b2, k_xl = jax.random.split(key, 6)

    batch, d_in, d_hidden, d_out = 8, 32, 64, 32

    x = jax.random.normal(k_x, (batch, d_in), dtype=jnp.float32)

    # Deterministic parameter init (synthetic; no checkpoint loading).
    w1 = jax.random.normal(k_w1, (d_in, d_hidden), dtype=jnp.float32) * 0.1
    b1 = jax.random.normal(k_b1, (d_hidden,), dtype=jnp.float32) * 0.1
    w2 = jax.random.normal(k_w2, (d_hidden, d_out), dtype=jnp.float32) * 0.1
    b2 = jax.random.normal(k_b2, (d_out,), dtype=jnp.float32) * 0.1

    # Sequential container with the fully fused Linear+ReLU+Linear layer.
    model = CustomModelPallas([
        make_fused_mlp_layer(w1, b1, w2, b2),
    ])

    out = model(x)
    out = jax.block_until_ready(out)

    ref = jnp.maximum(x @ w1 + b1, 0.0) @ w2 + b2
    assert out.shape == (batch, d_out)
    assert jnp.allclose(out, ref, atol=1e-5, rtol=1e-5)

    # Also exercise the tiled lane-dense large-batch path, including the
    # non-divisible-batch padding (B=1000, block_b=512 -> 2 grid steps).
    x_large = jax.random.normal(k_xl, (1000, d_in), dtype=jnp.float32)
    out_large = fused_mlp(x_large, w1, b1, w2, b2, block_b=512)
    out_large = jax.block_until_ready(out_large)
    ref_large = jnp.maximum(x_large @ w1 + b1, 0.0) @ w2 + b2
    assert out_large.shape == (1000, d_out)
    assert jnp.allclose(out_large, ref_large, atol=1e-4, rtol=1e-4)

    print("KERNEL_OK")
</pallas_src>

<mosaic_0001>
module attributes {stable_mosaic.version = 11 : i64} {
  func.func @_fused_mlp_kernel(%arg0: memref<8x32xf32, #tpu.memory_space<vmem>>, %arg1: memref<32x64xf32, #tpu.memory_space<vmem>>, %arg2: memref<1x64xf32, #tpu.memory_space<vmem>>, %arg3: memref<64x32xf32, #tpu.memory_space<vmem>>, %arg4: memref<1x32xf32, #tpu.memory_space<vmem>>, %arg5: memref<8x32xf32, #tpu.memory_space<vmem>>) attributes {dimension_semantics = [], scalar_prefetch = 0 : i64, scratch_operands = 0 : i64, tpu.core_type = #tpu.core_type<tc>} {
    %c0 = arith.constant 0 : index
    %c0_0 = arith.constant 0 : index
    %0 = vector.load %arg0[%c0, %c0_0] : memref<8x32xf32, #tpu.memory_space<vmem>>, vector<8x32xf32>
    %c0_1 = arith.constant 0 : index
    %c0_2 = arith.constant 0 : index
    %1 = vector.load %arg1[%c0_1, %c0_2] : memref<32x64xf32, #tpu.memory_space<vmem>>, vector<32x64xf32>
    %cst = arith.constant dense<0.000000e+00> : vector<8x64xf32>
    %2 = tpu.matmul %0, %1, %cst {dimension_numbers = #tpu.dot_dimension_numbers<[1], [0], [0], [1], [0, 0, 1, 1], [], []>} : vector<8x32xf32>, vector<32x64xf32>, vector<8x64xf32> -> vector<8x64xf32>
    %c0_3 = arith.constant 0 : index
    %c0_4 = arith.constant 0 : index
    %3 = vector.load %arg2[%c0_3, %c0_4] : memref<1x64xf32, #tpu.memory_space<vmem>>, vector<1x64xf32>
    %4 = vector.broadcast %3 : vector<1x64xf32> to vector<8x64xf32>
    %5 = arith.addf %2, %4 : vector<8x64xf32>
    %cst_5 = arith.constant 0.000000e+00 : f32
    %6 = vector.broadcast %cst_5 : f32 to vector<8x64xf32>
    %7 = arith.maximumf %5, %6 : vector<8x64xf32>
    %c0_6 = arith.constant 0 : index
    %c0_7 = arith.constant 0 : index
    %8 = vector.load %arg3[%c0_6, %c0_7] : memref<64x32xf32, #tpu.memory_space<vmem>>, vector<64x32xf32>
    %cst_8 = arith.constant dense<0.000000e+00> : vector<8x32xf32>
    %9 = tpu.matmul %7, %8, %cst_8 {dimension_numbers = #tpu.dot_dimension_numbers<[1], [0], [0], [1], [0, 0, 1, 1], [], []>} : vector<8x64xf32>, vector<64x32xf32>, vector<8x32xf32> -> vector<8x32xf32>
    %c0_9 = arith.constant 0 : index
    %c0_10 = arith.constant 0 : index
    %10 = vector.load %arg4[%c0_9, %c0_10] : memref<1x32xf32, #tpu.memory_space<vmem>>, vector<1x32xf32>
    %11 = vector.broadcast %10 : vector<1x32xf32> to vector<8x32xf32>
    %12 = arith.addf %9, %11 : vector<8x32xf32>
    %c0_11 = arith.constant 0 : index
    %c0_12 = arith.constant 0 : index
    %13 = vector.load %arg5[%c0_11, %c0_12] : memref<8x32xf32, #tpu.memory_space<vmem>>, vector<8x32xf32>
    tpu.vector_store %arg5[%c0_11, %c0_12], %12 {strides = array<i32>} : memref<8x32xf32, #tpu.memory_space<vmem>>, vector<8x32xf32>,
    return
  }
}

</mosaic_0001>

<llo_original>
// kernel: tpu_custom_call.1
$region0: #{tpu_custom_call.1}
  #allocation0 [shape = 'u32[]', space=smem, size = 0x4, offset = 0x4, fixed_abs, tag = 'smem constant byte address 0x4 - core index']
  #allocation1 [shape = 'u32[144,128]{1,0:T(1,128)}', space=vmem, size = 0x12000, scoped, tag = 'internal scratch']
  %s0 = inlined_call_operand.vmem [shape: f32[8,32], index: 0, kind: input, shape index: {}]
  %s1 = inlined_call_operand.vmem [shape: f32[32,64], index: 1, kind: input, shape index: {}]
  %s2 = inlined_call_operand.vmem [shape: f32[1,64], index: 2, kind: input, shape index: {}]
  %s3 = inlined_call_operand.vmem [shape: f32[64,32], index: 3, kind: input, shape index: {}]
  %s4 = inlined_call_operand.vmem [shape: f32[1,32], index: 4, kind: input, shape index: {}]
  %s5 = inlined_call_operand.hbm [shape: f32[8,32], index: 5, kind: output, shape index: {}]
  %s6 = sld [smem:[#allocation0]]
  $region30: #{tpu_custom_call.1} parent=0
    _
  %s8 = ssub.s32 1, %s6
  %s9 = scalar_select 0, %s8, %s6
  $region1: #{tpu_custom_call.1} parent=0
    #allocation2 [shape = 'u8[4096]{0}', space=vmem, size = 0x1000, scoped, tag = 'output window, operand 0, single buffered']
    #allocation3 [shape = 's32[1]{0}', space=sflag, size = 0x4, scoped, tag = 'scoped memory for tpu_custom_call.1']
    %10 = vsyncpa [#allocation3], 0
    // Predicated region
    $region2: #{tpu_custom_call.1} parent=1 // pred_check
      _
    $region3: #{tpu_custom_call.1} parent=1 // pred_check_branch
      %12 = sbr.rel (0) target = $region5
    $region4: #{tpu_custom_call.1} parent=1 // pred_region
      _
    $region5: #{tpu_custom_call.1} parent=1 // pred_fallthru
      _
    // Predicated region
    $region6: #{tpu_custom_call.1} parent=1 // pred_check
      _
    $region7: #{tpu_custom_call.1} parent=1 // pred_check_branch
      %14 = sbr.rel (0) target = $region9
    $region8: #{tpu_custom_call.1} parent=1 // pred_region
      _
    $region9: #{tpu_custom_call.1} parent=1 // pred_fallthru
      _
    // Predicated region
    $region10: #{tpu_custom_call.1} parent=1 // pred_check
      _
    $region11: #{tpu_custom_call.1} parent=1 // pred_check_branch
      %16 = sbr.rel (0) target = $region13
    $region12: #{tpu_custom_call.1} parent=1 // pred_region
      _
    $region13: #{tpu_custom_call.1} parent=1 // pred_fallthru
      _
    // Predicated region
    $region14: #{tpu_custom_call.1} parent=1 // pred_check
      _
    $region15: #{tpu_custom_call.1} parent=1 // pred_check_branch
      %18 = sbr.rel (0) target = $region17
    $region16: #{tpu_custom_call.1} parent=1 // pred_region
      _
    $region17: #{tpu_custom_call.1} parent=1 // pred_fallthru
      _
    // Predicated region
    $region18: #{tpu_custom_call.1} parent=1 // pred_check
      _
    $region19: #{tpu_custom_call.1} parent=1 // pred_check_branch
      %20 = sbr.rel (0) target = $region21
    $region20: #{tpu_custom_call.1} parent=1 // pred_region
      _
    $region21: #{tpu_custom_call.1} parent=1 // pred_fallthru
      _
    %v21 = vld [vmem:[%s0] sm:$0xff]
    %v22 = vld [vmem:[%s1] sm:$0xff]
    %v23 = vld [vmem:[%s1 + $0x8] sm:$0xff]
    %v24 = vld [vmem:[%s1 + $0x10] sm:$0xff]
    %v25 = vld [vmem:[%s1 + $0x18] sm:$0xff]
    %v26 = vld [vmem:[%s2] sm:$0x1]
    %v28 = vlaneseq
    %v29 = vshrl.u32 %v28, 7
    %v30 = vsub.s32 0, %v29
    %v31 = vrot.slane %v26, %v30
    %vm33 = vcmask 261120
    %v35 = vsel %vm33, %v21, 0
    %37 = vmatprep.subr.mxu0 0.0
    %38 = vmatpush1.msra.mxu0 %v22
    %39 = vmatprep.subr.mxu0 0.0
    %40 = vmatpush1.msra.mxu0 %v23
    %41 = vmatprep.subr.mxu0 0.0
    %42 = vmatpush1.msra.mxu0 %v24
    %43 = vmatprep.subr.mxu0 0.0
    %44 = vmatpush1.msra.mxu0 %v25
    %45 = vmatprep.subr.mxu0 0.0
    %46 = vmatpush1.msra.mxu0 0.0
    %47 = vmatprep.subr.mxu0 0.0
    %48 = vmatpush1.msra.mxu0 0.0
    %49 = vmatprep.subr.mxu0 0.0
    %50 = vmatpush1.msra.mxu0 0.0
    %51 = vmatprep.subr.mxu0 0.0
    %52 = vmatpush1.msra.mxu0 0.0
    %53 = vmatprep.subr.mxu0 0.0
    %54 = vmatpush1.msra.mxu0 0.0
    %55 = vmatprep.subr.mxu0 0.0
    %56 = vmatpush1.msra.mxu0 0.0
    %57 = vmatprep.subr.mxu0 0.0
    %58 = vmatpush1.msra.mxu0 0.0
    %59 = vmatprep.subr.mxu0 0.0
    %60 = vmatpush1.msra.mxu0 0.0
    %61 = vmatprep.subr.mxu0 0.0
    %62 = vmatpush1.msra.mxu0 0.0
    %63 = vmatprep.subr.mxu0 0.0
    %64 = vmatpush1.msra.mxu0 0.0
    %65 = vmatprep.subr.mxu0 0.0
    %66 = vmatpush1.msra.mxu0 0.0
    %67 = vmatprep.subr.mxu0 0.0
    %68 = vmatpush1.msra.mxu0 0.0
    %69 = vmatprep.subr.mxu0 0.0
    %70 = vmatpush1.msra.mxu0 0.0
    %71 = vmatprep.subr.mxu0 0.0
    %72 = vmatpush1.msra.mxu0 0.0
    %73 = vmatprep.subr.mxu0 0.0
    %74 = vmatpush1.msra.mxu0 0.0
    %75 = vmatprep.subr.mxu0 0.0
    %76 = vmatpush1.msra.mxu0 0.0
    %77 = vmatprep.subr.mxu0 0.0
    %78 = vmatpush1.msra.mxu0 0.0
    %79 = vmatprep.subr.mxu0 0.0
    %80 = vmatpush1.msra.mxu0 0.0
    %81 = vmatprep.subr.mxu0 0.0
    %82 = vmatpush1.msra.mxu0 0.0
    %83 = vmatprep.subr.mxu0 0.0
    %84 = vmatpush1.msra.mxu0 0.0
    %85 = vmatprep.subr.mxu0 0.0
    %86 = vmatpush1.msra.mxu0 0.0
    %87 = vmatprep.subr.mxu0 0.0
    %88 = vmatpush1.msra.mxu0 0.0
    %89 = vmatprep.subr.mxu0 0.0
    %90 = vmatpush1.msra.mxu0 0.0
    %91 = vmatprep.subr.mxu0 0.0
    %92 = vmatpush1.msra.mxu0 0.0
    %93 = vmatprep.subr.mxu0 0.0
    %94 = vmatpush1.msra.mxu0 0.0
    %95 = vmatprep.subr.mxu0 0.0
    %96 = vmatpush1.msra.mxu0 0.0
    %97 = vmatprep.subr.mxu0 0.0
    %98 = vmatpush1.msra.mxu0 0.0
    %99 = vmatprep.subr.mxu0 0.0
    %100 = vmatpush1.msra.mxu0 0.0
    %101 = vmatprep.mubr.f32.mxu0 0.0
    %102 = vmatmul.mubr.f32.gmra.mrb[0].mxu0 %v35
    %v103 = vpop.f32.mrb[0].mxu0
    %v104 = vadd.f32 %v31, %v103
    %v105 = vpop.f32.mrb[0].mxu0
    %106 = vdwg.mxu0
    %v107 = vmax.f32 %v104, 0.0
    %v108 = vld [vmem:[%s3] sm:$0xff]
    %v109 = vld [vmem:[%s3 + $0x8] sm:$0xff]
    %v110 = vld [vmem:[%s3 + $0x10] sm:$0xff]
    %v111 = vld [vmem:[%s3 + $0x18] sm:$0xff]
    %v112 = vld [vmem:[%s3 + $0x20] sm:$0xff]
    %v113 = vld [vmem:[%s3 + $0x28] sm:$0xff]
    %v114 = vld [vmem:[%s3 + $0x30] sm:$0xff]
    %v115 = vld [vmem:[%s3 + $0x38] sm:$0xff]
    %v116 = vld [vmem:[%s4] sm:$0x1]
    %v118 = vlaneseq
    %v119 = vshrl.u32 %v118, 7
    %v120 = vsub.s32 0, %v119
    %v121 = vrot.slane %v116, %v120
    %vm123 = vcmask 523264
    %v125 = vsel %vm123, %v107, 0
    %127 = vmatprep.subr.mxu0 0.0
    %128 = vmatpush1.msra.mxu0 %v108
    %129 = vmatprep.subr.mxu0 0.0
    %130 = vmatpush1.msra.mxu0 %v109
    %131 = vmatprep.subr.mxu0 0.0
    %132 = vmatpush1.msra.mxu0 %v110
    %133 = vmatprep.subr.mxu0 0.0
    %134 = vmatpush1.msra.mxu0 %v111
    %135 = vmatprep.subr.mxu0 0.0
    %136 = vmatpush1.msra.mxu0 %v112
    %137 = vmatprep.subr.mxu0 0.0
    %138 = vmatpush1.msra.mxu0 %v113
    %139 = vmatprep.subr.mxu0 0.0
    %140 = vmatpush1.msra.mxu0 %v114
    %141 = vmatprep.subr.mxu0 0.0
    %142 = vmatpush1.msra.mxu0 %v115
    %143 = vmatprep.subr.mxu0 0.0
    %144 = vmatpush1.msra.mxu0 0.0
    %145 = vmatprep.subr.mxu0 0.0
    %146 = vmatpush1.msra.mxu0 0.0
    %147 = vmatprep.subr.mxu0 0.0
    %148 = vmatpush1.msra.mxu0 0.0
    %149 = vmatprep.subr.mxu0 0.0
    %150 = vmatpush1.msra.mxu0 0.0
    %151 = vmatprep.subr.mxu0 0.0
    %152 = vmatpush1.msra.mxu0 0.0
    %153 = vmatprep.subr.mxu0 0.0
    %154 = vmatpush1.msra.mxu0 0.0
    %155 = vmatprep.subr.mxu0 0.0
    %156 = vmatpush1.msra.mxu0 0.0
    %157 = vmatprep.subr.mxu0 0.0
    %158 = vmatpush1.msra.mxu0 0.0
    %159 = vmatprep.subr.mxu0 0.0
    %160 = vmatpush1.msra.mxu0 0.0
    %161 = vmatprep.subr.mxu0 0.0
    %162 = vmatpush1.msra.mxu0 0.0
    %163 = vmatprep.subr.mxu0 0.0
    %164 = vmatpush1.msra.mxu0 0.0
    %165 = vmatprep.subr.mxu0 0.0
    %166 = vmatpush1.msra.mxu0 0.0
    %167 = vmatprep.subr.mxu0 0.0
    %168 = vmatpush1.msra.mxu0 0.0
    %169 = vmatprep.subr.mxu0 0.0
    %170 = vmatpush1.msra.mxu0 0.0
    %171 = vmatprep.subr.mxu0 0.0
    %172 = vmatpush1.msra.mxu0 0.0
    %173 = vmatprep.subr.mxu0 0.0
    %174 = vmatpush1.msra.mxu0 0.0
    %175 = vmatprep.subr.mxu0 0.0
    %176 = vmatpush1.msra.mxu0 0.0
    %177 = vmatprep.subr.mxu0 0.0
    %178 = vmatpush1.msra.mxu0 0.0
    %179 = vmatprep.subr.mxu0 0.0
    %180 = vmatpush1.msra.mxu0 0.0
    %181 = vmatprep.subr.mxu0 0.0
    %182 = vmatpush1.msra.mxu0 0.0
    %183 = vmatprep.subr.mxu0 0.0
    %184 = vmatpush1.msra.mxu0 0.0
    %185 = vmatprep.subr.mxu0 0.0
    %186 = vmatpush1.msra.mxu0 0.0
    %187 = vmatprep.subr.mxu0 0.0
    %188 = vmatpush1.msra.mxu0 0.0
    %189 = vmatprep.subr.mxu0 0.0
    %190 = vmatpush1.msra.mxu0 0.0
    %191 = vmatprep.mubr.f32.mxu0 0.0
    %192 = vmatmul.mubr.f32.gmra.mrb[0].mxu0 %v125
    %v193 = vpop.f32.mrb[0].mxu0
    %v194 = vadd.f32 %v121, %v193
    %v195 = vpop.f32.mrb[0].mxu0
    %196 = vdwg.mxu0
    %197 = vst.msk [vmem:[#allocation2] sm:$0xff] %vm33, %v194
    // Predicated region
    $region22: #{tpu_custom_call.1} parent=1 // pred_check
      _
    $region23: #{tpu_custom_call.1} parent=1 // pred_check_branch
      %199 = sbr.rel (0) target = $region25
    $region24: #{tpu_custom_call.1} parent=1 // pred_region
      %s201 = ssub.s32 128, 128
      %202 = vsyncadd [#allocation3], %s201
      %s204 = sshll.u32 [#allocation2], 4
      %s205 = int_to_ptr.vmem [resolvable:$true] %s204
      %207 = dma.vmem_to_hbm [thread:$0]  %s205, 128, %s5, [#allocation3]
    $region25: #{tpu_custom_call.1} parent=1 // pred_fallthru
      _
    // Predicated region
    $region26: #{tpu_custom_call.1} parent=1 // pred_check
      _
    $region27: #{tpu_custom_call.1} parent=1 // pred_check_branch
      %209 = sbr.rel (0) target = $region29
    $region28: #{tpu_custom_call.1} parent=1 // pred_region
      %210 = dma.done [#allocation3], 128
    $region29: #{tpu_custom_call.1} parent=1 // pred_fallthru
      _
    %211 = vsyncpa [#allocation3], 1

</llo_original>
